<compile_context>
chip_gen: v5e
topology: v5e:2x2
jax: 0.10.0
libtpu: 0.0.40
codegen_flags: <defaults>
</compile_context>

<pallas_src>
import functools

import jax
import jax.numpy as jnp
from jax import lax
from jax.experimental import pallas as pl
from jax.experimental.pallas import tpu as pltpu

EPS = 1e-5


def _round_up(x, m):
    return (x + m - 1) // m * m


def _bottleneck_kernel(inv_count, pp,
                       x_ref, w1_ref, g1_ref, b1_ref,
                       w2s_ref, g2_ref, b2_ref,
                       w3_ref, g3_ref, b3_ref,
                       mprev_ref, mnext_ref, valid_ref,
                       o_ref):
    # x_ref: (Cin_pad, T_pad) f32 — channels on sublanes, flattened (N, L) on lanes.
    x = x_ref[...]
    mprev = mprev_ref[...]          # (1, T_pad): 1 where a left neighbour exists (same sample)
    mnext = mnext_ref[...]          # (1, T_pad): 1 where a right neighbour exists (same sample)
    valid = valid_ref[...]          # (1, T_pad): 1 on real (non-pad) columns
    t_pad = x.shape[1]

    def bn(h, g, b):
        # Folded training-mode BatchNorm1d: one reduction pass, then h*scale + shift.
        # Zero-padded columns contribute 0 to both sums; inv_count = 1/(N*L).
        s = jnp.sum(h, axis=1, keepdims=True)
        ss = jnp.sum(h * h, axis=1, keepdims=True)
        mean = s * inv_count
        var = ss * inv_count - mean * mean
        scale = g * lax.rsqrt(var + EPS)
        shift = b - mean * scale
        return h * scale + shift

    # ---- conv1 (1x1) -> bn1 -> relu ----
    h1 = jnp.dot(w1_ref[...], x, preferred_element_type=jnp.float32)      # (Pp, T)
    a1 = jnp.maximum(bn(h1, g1_ref[...], b1_ref[...]), 0.0)

    # ---- conv2 (k=3, pad=1, stride=1) -> bn2 -> relu ----
    # Single fused MXU call: the three tap weights are stacked along output rows.
    taps = jnp.dot(w2s_ref[...], a1, preferred_element_type=jnp.float32)  # (3*Pp, T)
    pa = taps[0 * pp:1 * pp, :]     # tap k=0 (needs left neighbour)
    pb = taps[1 * pp:2 * pp, :]     # tap k=1 (center)
    pc = taps[2 * pp:3 * pp, :]     # tap k=2 (needs right neighbour)
    h2 = (mprev * pltpu.roll(pa, shift=1, axis=1)
          + valid * pb
          + mnext * pltpu.roll(pc, shift=t_pad - 1, axis=1))
    # mask pad columns so downstream BN sums stay clean (BN shift is nonzero there)
    a2 = jnp.maximum(bn(h2, g2_ref[...], b2_ref[...]), 0.0) * valid

    # ---- conv3 (1x1) -> bn3 ----
    h3 = jnp.dot(w3_ref[...], a2, preferred_element_type=jnp.float32)     # (Cout_p, T)
    h3 = bn(h3, g3_ref[...], b3_ref[...])

    # ---- residual add + relu (downsample=None, stride=1 => identity = x) ----
    o_ref[...] = jnp.maximum(h3 + x, 0.0).astype(o_ref.dtype)


def bottleneck_forward(x_ncl, params):
    """x_ncl: (N, Cin, L) float32, PyTorch Conv1d layout. Returns (N, Cin, L)."""
    (w1_t, g1, b1, w2_t, g2, b2, w3_t, g3, b3) = params
    N, Cin, L = x_ncl.shape
    P = w1_t.shape[0]
    Cout = w3_t.shape[0]
    assert Cout == Cin, "identity residual requires inplanes == planes * expansion"

    total = N * L
    t_pad = _round_up(max(total, 1), 128)      # lane-dense last dim
    Pp = _round_up(P, 8)                       # sublane-aligned channel dims
    Cin_p = _round_up(Cin, 8)
    Cout_p = _round_up(Cout, 8)
    f32 = jnp.float32

    # (C, N*L) slab: only a leading-dim permute (lane axis L untouched), then zero-pad.
    x2 = jnp.transpose(x_ncl, (1, 0, 2)).reshape(Cin, total).astype(f32)
    x_pad = jnp.zeros((Cin_p, t_pad), f32).at[:Cin, :total].set(x2)

    # Weights as (out, in), zero-padded; conv2 taps stacked along output rows.
    w1 = jnp.zeros((Pp, Cin_p), f32).at[:P, :Cin].set(w1_t[:, :, 0])
    w2s = (jnp.zeros((3, Pp, Pp), f32)
           .at[:, :P, :P].set(jnp.transpose(w2_t, (2, 0, 1)))
           .reshape(3 * Pp, Pp))
    w3 = jnp.zeros((Cout_p, Pp), f32).at[:Cout, :P].set(w3_t[:, :, 0])

    def colvec(v, n):
        return jnp.zeros((n, 1), f32).at[:v.shape[0], 0].set(v)

    g1p, b1p = colvec(g1, Pp), colvec(b1, Pp)
    g2p, b2p = colvec(g2, Pp), colvec(b2, Pp)
    g3p, b3p = colvec(g3, Cout_p), colvec(b3, Cout_p)

    # Precomputed boundary / validity masks (no in-kernel iota or modulo).
    pos = jnp.arange(t_pad)
    in_sample = pos % L
    real = pos < total
    mprev = (real & (in_sample != 0)).astype(f32).reshape(1, t_pad)
    mnext = (real & (in_sample != (L - 1))).astype(f32).reshape(1, t_pad)
    valid = real.astype(f32).reshape(1, t_pad)

    vspec = pl.BlockSpec(memory_space=pltpu.MemorySpace.VMEM)
    # live f32 slabs: x, out, h1/a1, 3 fused taps, h2/a2, h3 (+ headroom)
    slab_bytes = 4 * t_pad * (Cin_p + 2 * Cout_p + 6 * Pp) + (1 << 20)
    vmem_limit = int(min(48 * 1024 * 1024, max(8 * 1024 * 1024, 4 * slab_bytes)))

    out_pad = pl.pallas_call(
        functools.partial(_bottleneck_kernel, 1.0 / float(total), Pp),
        out_shape=jax.ShapeDtypeStruct((Cout_p, t_pad), f32),
        in_specs=[vspec] * 13,
        out_specs=vspec,
        input_output_aliases={0: 0},   # x slab and output have identical padded shape
        compiler_params=pltpu.CompilerParams(vmem_limit_bytes=vmem_limit),
    )(x_pad, w1, g1p, b1p, w2s, g2p, b2p, w3, g3p, b3p, mprev, mnext, valid)

    out = out_pad[:Cout, :total].reshape(Cout, N, L)
    return jnp.transpose(out, (1, 0, 2))


def _reference_forward(x, params):
    """Pure-JAX reference using lax conv, matching PyTorch training-mode BN."""
    (w1_t, g1, b1, w2_t, g2, b2, w3_t, g3, b3) = params

    def conv(h, w, pad):
        return lax.conv_general_dilated(
            h, w, window_strides=(1,), padding=[(pad, pad)],
            dimension_numbers=('NCW', 'OIW', 'NCW'))

    def bn(h, g, b):
        mean = h.mean(axis=(0, 2), keepdims=True)
        var = ((h - mean) ** 2).mean(axis=(0, 2), keepdims=True)
        return (h - mean) / jnp.sqrt(var + EPS) * g.reshape(1, -1, 1) + b.reshape(1, -1, 1)

    out = jax.nn.relu(bn(conv(x, w1_t, 0), g1, b1))
    out = jax.nn.relu(bn(conv(out, w2_t, 1), g2, b2))
    out = bn(conv(out, w3_t, 0), g3, b3)
    return jax.nn.relu(out + x)


def make_params(key, inplanes, planes, expansion=4):
    ks = jax.random.split(key, 3)
    w1_t = jax.random.normal(ks[0], (planes, inplanes, 1), jnp.float32) * 0.2
    w2_t = jax.random.normal(ks[1], (planes, planes, 3), jnp.float32) * 0.2
    w3_t = jax.random.normal(ks[2], (planes * expansion, planes, 1), jnp.float32) * 0.2
    g1 = 1.0 + 0.05 * jnp.arange(planes, dtype=jnp.float32)
    b1 = 0.01 * jnp.arange(planes, dtype=jnp.float32)
    g2 = 1.0 - 0.03 * jnp.arange(planes, dtype=jnp.float32)
    b2 = -0.02 * jnp.arange(planes, dtype=jnp.float32)
    g3 = 1.0 + 0.02 * jnp.arange(planes * expansion, dtype=jnp.float32)
    b3 = 0.005 * jnp.arange(planes * expansion, dtype=jnp.float32)
    return (w1_t, g1, b1, w2_t, g2, b2, w3_t, g3, b3)


if __name__ == "__main__":
    # Bottleneck(inplanes=16, planes=4), stride=1, downsample=None
    N, inplanes, planes, L = 2, 16, 4, 16
    key = jax.random.PRNGKey(0)
    kx, kp = jax.random.split(key)
    x = jax.random.normal(kx, (N, inplanes, L), jnp.float32)
    params = make_params(kp, inplanes, planes)

    fwd = jax.jit(bottleneck_forward)
    out = jax.block_until_ready(fwd(x, params))

    ref = _reference_forward(x, params)
    assert out.shape == (N, inplanes, L)
    assert jnp.allclose(out, ref, atol=2e-4, rtol=2e-4), "mismatch vs reference"
    print("KERNEL_OK")
</pallas_src>

<mosaic_0001>
module attributes {stable_mosaic.version = 11 : i64} {
  func.func @_bottleneck_kernel(%arg0: memref<16x128xf32, #tpu.memory_space<vmem>>, %arg1: memref<8x16xf32, #tpu.memory_space<vmem>>, %arg2: memref<8x1xf32, #tpu.memory_space<vmem>>, %arg3: memref<8x1xf32, #tpu.memory_space<vmem>>, %arg4: memref<24x8xf32, #tpu.memory_space<vmem>>, %arg5: memref<8x1xf32, #tpu.memory_space<vmem>>, %arg6: memref<8x1xf32, #tpu.memory_space<vmem>>, %arg7: memref<16x8xf32, #tpu.memory_space<vmem>>, %arg8: memref<16x1xf32, #tpu.memory_space<vmem>>, %arg9: memref<16x1xf32, #tpu.memory_space<vmem>>, %arg10: memref<1x128xf32, #tpu.memory_space<vmem>>, %arg11: memref<1x128xf32, #tpu.memory_space<vmem>>, %arg12: memref<1x128xf32, #tpu.memory_space<vmem>>, %arg13: memref<16x128xf32, #tpu.memory_space<vmem>>) attributes {dimension_semantics = [], scalar_prefetch = 0 : i64, scratch_operands = 0 : i64, tpu.core_type = #tpu.core_type<tc>} {
    %c0 = arith.constant 0 : index
    %c0_0 = arith.constant 0 : index
    %0 = vector.load %arg0[%c0, %c0_0] : memref<16x128xf32, #tpu.memory_space<vmem>>, vector<16x128xf32>
    %c0_1 = arith.constant 0 : index
    %c0_2 = arith.constant 0 : index
    %1 = vector.load %arg10[%c0_1, %c0_2] : memref<1x128xf32, #tpu.memory_space<vmem>>, vector<1x128xf32>
    %c0_3 = arith.constant 0 : index
    %c0_4 = arith.constant 0 : index
    %2 = vector.load %arg11[%c0_3, %c0_4] : memref<1x128xf32, #tpu.memory_space<vmem>>, vector<1x128xf32>
    %c0_5 = arith.constant 0 : index
    %c0_6 = arith.constant 0 : index
    %3 = vector.load %arg12[%c0_5, %c0_6] : memref<1x128xf32, #tpu.memory_space<vmem>>, vector<1x128xf32>
    %c0_7 = arith.constant 0 : index
    %c0_8 = arith.constant 0 : index
    %4 = vector.load %arg1[%c0_7, %c0_8] : memref<8x16xf32, #tpu.memory_space<vmem>>, vector<8x16xf32>
    %cst = arith.constant dense<0.000000e+00> : vector<8x128xf32>
    %5 = tpu.matmul %4, %0, %cst {dimension_numbers = #tpu.dot_dimension_numbers<[1], [0], [0], [1], [0, 0, 1, 1], [], []>} : vector<8x16xf32>, vector<16x128xf32>, vector<8x128xf32> -> vector<8x128xf32>
    %c0_9 = arith.constant 0 : index
    %c0_10 = arith.constant 0 : index
    %6 = vector.load %arg2[%c0_9, %c0_10] : memref<8x1xf32, #tpu.memory_space<vmem>>, vector<8x1xf32>
    %c0_11 = arith.constant 0 : index
    %c0_12 = arith.constant 0 : index
    %7 = vector.load %arg3[%c0_11, %c0_12] : memref<8x1xf32, #tpu.memory_space<vmem>>, vector<8x1xf32>
    %cst_13 = arith.constant dense<0.000000e+00> : vector<8xf32>
    %8 = vector.multi_reduction <add>, %5, %cst_13 [1] : vector<8x128xf32> to vector<8xf32>
    %9 = vector.shape_cast %8 : vector<8xf32> to vector<8x1xf32>
    %10 = arith.mulf %5, %5 : vector<8x128xf32>
    %cst_14 = arith.constant dense<0.000000e+00> : vector<8xf32>
    %11 = vector.multi_reduction <add>, %10, %cst_14 [1] : vector<8x128xf32> to vector<8xf32>
    %12 = vector.shape_cast %11 : vector<8xf32> to vector<8x1xf32>
    %cst_15 = arith.constant 3.125000e-02 : f32
    %13 = vector.broadcast %cst_15 : f32 to vector<8x1xf32>
    %14 = arith.mulf %9, %13 : vector<8x1xf32>
    %cst_16 = arith.constant 3.125000e-02 : f32
    %15 = vector.broadcast %cst_16 : f32 to vector<8x1xf32>
    %16 = arith.mulf %12, %15 : vector<8x1xf32>
    %17 = arith.mulf %14, %14 : vector<8x1xf32>
    %18 = arith.subf %16, %17 : vector<8x1xf32>
    %cst_17 = arith.constant 9.99999974E-6 : f32
    %19 = vector.broadcast %cst_17 : f32 to vector<8x1xf32>
    %20 = arith.addf %18, %19 : vector<8x1xf32>
    %21 = math.rsqrt %20 : vector<8x1xf32>
    %22 = arith.mulf %6, %21 : vector<8x1xf32>
    %23 = arith.mulf %14, %22 : vector<8x1xf32>
    %24 = arith.subf %7, %23 : vector<8x1xf32>
    %25 = vector.broadcast %22 : vector<8x1xf32> to vector<8x128xf32>
    %26 = arith.mulf %5, %25 : vector<8x128xf32>
    %27 = vector.broadcast %24 : vector<8x1xf32> to vector<8x128xf32>
    %28 = arith.addf %26, %27 : vector<8x128xf32>
    %cst_18 = arith.constant 0.000000e+00 : f32
    %29 = vector.broadcast %cst_18 : f32 to vector<8x128xf32>
    %30 = arith.maximumf %28, %29 : vector<8x128xf32>
    %c0_19 = arith.constant 0 : index
    %c0_20 = arith.constant 0 : index
    %31 = vector.load %arg4[%c0_19, %c0_20] : memref<24x8xf32, #tpu.memory_space<vmem>>, vector<24x8xf32>
    %cst_21 = arith.constant dense<0.000000e+00> : vector<24x128xf32>
    %32 = tpu.matmul %31, %30, %cst_21 {dimension_numbers = #tpu.dot_dimension_numbers<[1], [0], [0], [1], [0, 0, 1, 1], [], []>} : vector<24x8xf32>, vector<8x128xf32>, vector<24x128xf32> -> vector<24x128xf32>
    %33 = vector.extract_strided_slice %32 {offsets = [0, 0], sizes = [8, 128], strides = [1, 1]} : vector<24x128xf32> to vector<8x128xf32>
    %34 = vector.extract_strided_slice %32 {offsets = [8, 0], sizes = [8, 128], strides = [1, 1]} : vector<24x128xf32> to vector<8x128xf32>
    %35 = vector.extract_strided_slice %32 {offsets = [16, 0], sizes = [8, 128], strides = [1, 1]} : vector<24x128xf32> to vector<8x128xf32>
    %c1_i32 = arith.constant 1 : i32
    %36 = tpu.dynamic_rotate %33 by %c1_i32 dim 1 : vector<8x128xf32>, i32 -> vector<8x128xf32>
    %37 = vector.broadcast %1 : vector<1x128xf32> to vector<8x128xf32>
    %38 = arith.mulf %37, %36 : vector<8x128xf32>
    %39 = vector.broadcast %3 : vector<1x128xf32> to vector<8x128xf32>
    %40 = arith.mulf %39, %34 : vector<8x128xf32>
    %41 = arith.addf %38, %40 : vector<8x128xf32>
    %c127_i32 = arith.constant 127 : i32
    %42 = tpu.dynamic_rotate %35 by %c127_i32 dim 1 : vector<8x128xf32>, i32 -> vector<8x128xf32>
    %43 = vector.broadcast %2 : vector<1x128xf32> to vector<8x128xf32>
    %44 = arith.mulf %43, %42 : vector<8x128xf32>
    %45 = arith.addf %41, %44 : vector<8x128xf32>
    %c0_22 = arith.constant 0 : index
    %c0_23 = arith.constant 0 : index
    %46 = vector.load %arg5[%c0_22, %c0_23] : memref<8x1xf32, #tpu.memory_space<vmem>>, vector<8x1xf32>
    %c0_24 = arith.constant 0 : index
    %c0_25 = arith.constant 0 : index
    %47 = vector.load %arg6[%c0_24, %c0_25] : memref<8x1xf32, #tpu.memory_space<vmem>>, vector<8x1xf32>
    %cst_26 = arith.constant dense<0.000000e+00> : vector<8xf32>
    %48 = vector.multi_reduction <add>, %45, %cst_26 [1] : vector<8x128xf32> to vector<8xf32>
    %49 = vector.shape_cast %48 : vector<8xf32> to vector<8x1xf32>
    %50 = arith.mulf %45, %45 : vector<8x128xf32>
    %cst_27 = arith.constant dense<0.000000e+00> : vector<8xf32>
    %51 = vector.multi_reduction <add>, %50, %cst_27 [1] : vector<8x128xf32> to vector<8xf32>
    %52 = vector.shape_cast %51 : vector<8xf32> to vector<8x1xf32>
    %cst_28 = arith.constant 3.125000e-02 : f32
    %53 = vector.broadcast %cst_28 : f32 to vector<8x1xf32>
    %54 = arith.mulf %49, %53 : vector<8x1xf32>
    %cst_29 = arith.constant 3.125000e-02 : f32
    %55 = vector.broadcast %cst_29 : f32 to vector<8x1xf32>
    %56 = arith.mulf %52, %55 : vector<8x1xf32>
    %57 = arith.mulf %54, %54 : vector<8x1xf32>
    %58 = arith.subf %56, %57 : vector<8x1xf32>
    %cst_30 = arith.constant 9.99999974E-6 : f32
    %59 = vector.broadcast %cst_30 : f32 to vector<8x1xf32>
    %60 = arith.addf %58, %59 : vector<8x1xf32>
    %61 = math.rsqrt %60 : vector<8x1xf32>
    %62 = arith.mulf %46, %61 : vector<8x1xf32>
    %63 = arith.mulf %54, %62 : vector<8x1xf32>
    %64 = arith.subf %47, %63 : vector<8x1xf32>
    %65 = vector.broadcast %62 : vector<8x1xf32> to vector<8x128xf32>
    %66 = arith.mulf %45, %65 : vector<8x128xf32>
    %67 = vector.broadcast %64 : vector<8x1xf32> to vector<8x128xf32>
    %68 = arith.addf %66, %67 : vector<8x128xf32>
    %cst_31 = arith.constant 0.000000e+00 : f32
    %69 = vector.broadcast %cst_31 : f32 to vector<8x128xf32>
    %70 = arith.maximumf %68, %69 : vector<8x128xf32>
    %71 = vector.broadcast %3 : vector<1x128xf32> to vector<8x128xf32>
    %72 = arith.mulf %70, %71 : vector<8x128xf32>
    %c0_32 = arith.constant 0 : index
    %c0_33 = arith.constant 0 : index
    %73 = vector.load %arg7[%c0_32, %c0_33] : memref<16x8xf32, #tpu.memory_space<vmem>>, vector<16x8xf32>
    %cst_34 = arith.constant dense<0.000000e+00> : vector<16x128xf32>
    %74 = tpu.matmul %73, %72, %cst_34 {dimension_numbers = #tpu.dot_dimension_numbers<[1], [0], [0], [1], [0, 0, 1, 1], [], []>} : vector<16x8xf32>, vector<8x128xf32>, vector<16x128xf32> -> vector<16x128xf32>
    %c0_35 = arith.constant 0 : index
    %c0_36 = arith.constant 0 : index
    %75 = vector.load %arg8[%c0_35, %c0_36] : memref<16x1xf32, #tpu.memory_space<vmem>>, vector<16x1xf32>
    %c0_37 = arith.constant 0 : index
    %c0_38 = arith.constant 0 : index
    %76 = vector.load %arg9[%c0_37, %c0_38] : memref<16x1xf32, #tpu.memory_space<vmem>>, vector<16x1xf32>
    %cst_39 = arith.constant dense<0.000000e+00> : vector<16xf32>
    %77 = vector.multi_reduction <add>, %74, %cst_39 [1] : vector<16x128xf32> to vector<16xf32>
    %78 = vector.shape_cast %77 : vector<16xf32> to vector<16x1xf32>
    %79 = arith.mulf %74, %74 : vector<16x128xf32>
    %cst_40 = arith.constant dense<0.000000e+00> : vector<16xf32>
    %80 = vector.multi_reduction <add>, %79, %cst_40 [1] : vector<16x128xf32> to vector<16xf32>
    %81 = vector.shape_cast %80 : vector<16xf32> to vector<16x1xf32>
    %cst_41 = arith.constant 3.125000e-02 : f32
    %82 = vector.broadcast %cst_41 : f32 to vector<16x1xf32>
    %83 = arith.mulf %78, %82 : vector<16x1xf32>
    %cst_42 = arith.constant 3.125000e-02 : f32
    %84 = vector.broadcast %cst_42 : f32 to vector<16x1xf32>
    %85 = arith.mulf %81, %84 : vector<16x1xf32>
    %86 = arith.mulf %83, %83 : vector<16x1xf32>
    %87 = arith.subf %85, %86 : vector<16x1xf32>
    %cst_43 = arith.constant 9.99999974E-6 : f32
    %88 = vector.broadcast %cst_43 : f32 to vector<16x1xf32>
    %89 = arith.addf %87, %88 : vector<16x1xf32>
    %90 = math.rsqrt %89 : vector<16x1xf32>
    %91 = arith.mulf %75, %90 : vector<16x1xf32>
    %92 = arith.mulf %83, %91 : vector<16x1xf32>
    %93 = arith.subf %76, %92 : vector<16x1xf32>
    %94 = vector.broadcast %91 : vector<16x1xf32> to vector<16x128xf32>
    %95 = arith.mulf %74, %94 : vector<16x128xf32>
    %96 = vector.broadcast %93 : vector<16x1xf32> to vector<16x128xf32>
    %97 = arith.addf %95, %96 : vector<16x128xf32>
    %98 = arith.addf %97, %0 : vector<16x128xf32>
    %cst_44 = arith.constant 0.000000e+00 : f32
    %99 = vector.broadcast %cst_44 : f32 to vector<16x128xf32>
    %100 = arith.maximumf %98, %99 : vector<16x128xf32>
    %c0_45 = arith.constant 0 : index
    %c0_46 = arith.constant 0 : index
    %101 = vector.load %arg13[%c0_45, %c0_46] : memref<16x128xf32, #tpu.memory_space<vmem>>, vector<16x128xf32>
    tpu.vector_store %arg13[%c0_45, %c0_46], %100 {strides = array<i32>} : memref<16x128xf32, #tpu.memory_space<vmem>>, vector<16x128xf32>,
    return
  }
}

</mosaic_0001>

<llo_original>
// kernel: bottleneck_forward.1
$region0: #{bottleneck_forward.1}
  #allocation0 [shape = 'u32[]', space=smem, size = 0x4, offset = 0x4, fixed_abs, tag = 'smem constant byte address 0x4 - core index']
  #allocation1 [shape = 'u32[72,128]{1,0:T(1,128)}', space=vmem, size = 0x9000, scoped, tag = 'internal scratch']
  %s0 = inlined_call_operand.vmem [shape: f32[16,128], index: 0, kind: input, shape index: {}, may-alias: {0,13}]
  %s1 = inlined_call_operand.vmem [shape: f32[8,16], index: 1, kind: input, shape index: {}]
  %s2 = inlined_call_operand.vmem [shape: f32[8,1], index: 2, kind: input, shape index: {}]
  %s3 = inlined_call_operand.vmem [shape: f32[8,1], index: 3, kind: input, shape index: {}]
  %s4 = inlined_call_operand.vmem [shape: f32[24,8], index: 4, kind: input, shape index: {}]
  %s5 = inlined_call_operand.vmem [shape: f32[8,1], index: 5, kind: input, shape index: {}]
  %s6 = inlined_call_operand.vmem [shape: f32[8,1], index: 6, kind: input, shape index: {}]
  %s7 = inlined_call_operand.vmem [shape: f32[16,8], index: 7, kind: input, shape index: {}]
  %s8 = inlined_call_operand.vmem [shape: f32[16,1], index: 8, kind: input, shape index: {}]
  %s9 = inlined_call_operand.vmem [shape: f32[16,1], index: 9, kind: input, shape index: {}]
  %s10 = inlined_call_operand.vmem [shape: f32[1,128], index: 10, kind: input, shape index: {}]
  %s11 = inlined_call_operand.vmem [shape: f32[1,128], index: 11, kind: input, shape index: {}]
  %s12 = inlined_call_operand.vmem [shape: f32[1,128], index: 12, kind: input, shape index: {}]
  %s13 = inlined_call_operand.vmem [shape: f32[16,128], index: 13, kind: output, shape index: {}, may-alias: {0,13}]
  %s14 = sld [smem:[#allocation0]]
  $region62: #{bottleneck_forward.1} parent=0
    _
  %s16 = ssub.s32 1, %s14
  %s17 = scalar_select 0, %s16, %s14
  // Predicated region
  $region2: #{bottleneck_forward.1} parent=0 // pred_check
    _
  $region3: #{bottleneck_forward.1} parent=0 // pred_check_branch
    %19 = sbr.rel (0) target = $region5
  $region4: #{bottleneck_forward.1} parent=0 // pred_region
    _
  $region5: #{bottleneck_forward.1} parent=0 // pred_fallthru
    _
  // Predicated region
  $region6: #{bottleneck_forward.1} parent=0 // pred_check
    _
  $region7: #{bottleneck_forward.1} parent=0 // pred_check_branch
    %21 = sbr.rel (0) target = $region9
  $region8: #{bottleneck_forward.1} parent=0 // pred_region
    _
  $region9: #{bottleneck_forward.1} parent=0 // pred_fallthru
    _
  // Predicated region
  $region10: #{bottleneck_forward.1} parent=0 // pred_check
    _
  $region11: #{bottleneck_forward.1} parent=0 // pred_check_branch
    %23 = sbr.rel (0) target = $region13
  $region12: #{bottleneck_forward.1} parent=0 // pred_region
    _
  $region13: #{bottleneck_forward.1} parent=0 // pred_fallthru
    _
  // Predicated region
  $region14: #{bottleneck_forward.1} parent=0 // pred_check
    _
  $region15: #{bottleneck_forward.1} parent=0 // pred_check_branch
    %25 = sbr.rel (0) target = $region17
  $region16: #{bottleneck_forward.1} parent=0 // pred_region
    _
  $region17: #{bottleneck_forward.1} parent=0 // pred_fallthru
    _
  // Predicated region
  $region18: #{bottleneck_forward.1} parent=0 // pred_check
    _
  $region19: #{bottleneck_forward.1} parent=0 // pred_check_branch
    %27 = sbr.rel (0) target = $region21
  $region20: #{bottleneck_forward.1} parent=0 // pred_region
    _
  $region21: #{bottleneck_forward.1} parent=0 // pred_fallthru
    _
  // Predicated region
  $region22: #{bottleneck_forward.1} parent=0 // pred_check
    _
  $region23: #{bottleneck_forward.1} parent=0 // pred_check_branch
    %29 = sbr.rel (0) target = $region25
  $region24: #{bottleneck_forward.1} parent=0 // pred_region
    _
  $region25: #{bottleneck_forward.1} parent=0 // pred_fallthru
    _
  // Predicated region
  $region26: #{bottleneck_forward.1} parent=0 // pred_check
    _
  $region27: #{bottleneck_forward.1} parent=0 // pred_check_branch
    %31 = sbr.rel (0) target = $region29
  $region28: #{bottleneck_forward.1} parent=0 // pred_region
    _
  $region29: #{bottleneck_forward.1} parent=0 // pred_fallthru
    _
  // Predicated region
  $region30: #{bottleneck_forward.1} parent=0 // pred_check
    _
  $region31: #{bottleneck_forward.1} parent=0 // pred_check_branch
    %33 = sbr.rel (0) target = $region33
  $region32: #{bottleneck_forward.1} parent=0 // pred_region
    _
  $region33: #{bottleneck_forward.1} parent=0 // pred_fallthru
    _
  // Predicated region
  $region34: #{bottleneck_forward.1} parent=0 // pred_check
    _
  $region35: #{bottleneck_forward.1} parent=0 // pred_check_branch
    %35 = sbr.rel (0) target = $region37
  $region36: #{bottleneck_forward.1} parent=0 // pred_region
    _
  $region37: #{bottleneck_forward.1} parent=0 // pred_fallthru
    _
  // Predicated region
  $region38: #{bottleneck_forward.1} parent=0 // pred_check
    _
  $region39: #{bottleneck_forward.1} parent=0 // pred_check_branch
    %37 = sbr.rel (0) target = $region41
  $region40: #{bottleneck_forward.1} parent=0 // pred_region
    _
  $region41: #{bottleneck_forward.1} parent=0 // pred_fallthru
    _
  // Predicated region
  $region42: #{bottleneck_forward.1} parent=0 // pred_check
    _
  $region43: #{bottleneck_forward.1} parent=0 // pred_check_branch
    %39 = sbr.rel (0) target = $region45
  $region44: #{bottleneck_forward.1} parent=0 // pred_region
    _
  $region45: #{bottleneck_forward.1} parent=0 // pred_fallthru
    _
  // Predicated region
  $region46: #{bottleneck_forward.1} parent=0 // pred_check
    _
  $region47: #{bottleneck_forward.1} parent=0 // pred_check_branch
    %41 = sbr.rel (0) target = $region49
  $region48: #{bottleneck_forward.1} parent=0 // pred_region
    _
  $region49: #{bottleneck_forward.1} parent=0 // pred_fallthru
    _
  // Predicated region
  $region50: #{bottleneck_forward.1} parent=0 // pred_check
    _
  $region51: #{bottleneck_forward.1} parent=0 // pred_check_branch
    %43 = sbr.rel (0) target = $region53
  $region52: #{bottleneck_forward.1} parent=0 // pred_region
    _
  $region53: #{bottleneck_forward.1} parent=0 // pred_fallthru
    _
  %v44 = vld [vmem:[%s0] sm:$0xff]
  %v45 = vld [vmem:[%s0 + $0x8] sm:$0xff]
  %v46 = vld [vmem:[%s10] sm:$0x1]
  %v47 = vld [vmem:[%s11] sm:$0x1]
  %v48 = vld [vmem:[%s12] sm:$0x1]
  %v49 = vld [vmem:[%s1] sm:$0xff]
  %vm50 = vcmask 130048
  %v52 = vsel %vm50, %v49, 0
  %54 = vmatpush.msra.mxu0 0.0
  %55 = vmatpush.msra.mxu0 0.0
  %56 = vmatpush.msra.mxu0 0.0
  %57 = vmatpush.msra.mxu0 0.0
  %58 = vmatpush.msra.mxu0 0.0
  %59 = vmatpush.msra.mxu0 0.0
  %60 = vmatpush.msra.mxu0 0.0
  %61 = vmatpush.msra.mxu0 0.0
  %62 = vmatpush.msra.mxu0 0.0
  %63 = vmatpush.msra.mxu0 0.0
  %64 = vmatpush.msra.mxu0 0.0
  %65 = vmatpush.msra.mxu0 0.0
  %66 = vmatpush.msra.mxu0 0.0
  %67 = vmatpush.msra.mxu0 0.0
  %68 = vmatpush.msra.mxu0 %v45
  %69 = vmatpush.msra.mxu0 %v44
  %70 = vmatmul.f32.gmra.mxu0 %v52
  %v71 = vpop.f32.mrf.mxu0
  %v72 = vadd.f32 0.0, %v71
  %73 = vdwg.mxu0
  %v74 = vld [vmem:[%s2] sm:$0xff]
  %v75 = vld [vmem:[%s3] sm:$0xff]
  %76 = vadd.xlane.f32.xlu0 %v72
  %v77 = vpop.xlane.xlu0 %76
  %v78 = vmul.f32 %v72, %v72
  %79 = vadd.xlane.f32.xlu0 %v78
  %v80 = vpop.xlane.xlu0 %79
  %v81 = vmul.f32 %v77, 0.03125
  %v82 = vmul.f32 %v80, 0.03125
  %v83 = vmul.f32 %v81, %v81
  %v84 = vsub.f32 %v82, %v83
  %v85 = vadd.f32 %v84, 1e-05
  %v86 = vrsqrt.pop %v85
  %v87 = vmul.f32 %v86, %v85
  %v88 = vmul.f32 %v87, %v86
  %v89 = vmul.f32 0.5, %v88
  %v90 = vsub.f32 1.5, %v89
  %v91 = vmul.f32 %v86, %v90
  %vm92 = vweird.f32 %v85
  %vm93 = vweird.f32 %v86
  %vm94 = vmor %vm92, %vm93
  %v95 = vsel %vm94, %v86, %v91
  %v96 = vmul.f32 %v74, %v95
  %v97 = vmul.f32 %v81, %v96
  %v98 = vsub.f32 %v75, %v97
  %100 = vset.pattern.permute.xlu0 0
  %101 = vperm.xlu0 %100, %v96
  %v102 = vpop.permute.xlu0 %101
  %v104 = vmul.f32 %v72, %v102
  %106 = vset.pattern.permute.xlu0 0
  %107 = vperm.xlu0 %106, %v98
  %v108 = vpop.permute.xlu0 %107
  %v110 = vadd.f32 %v104, %v108
  %v111 = vmax.f32 %v110, 0.0
  %v112 = vld [vmem:[%s4] sm:$0xff]
  %v113 = vld [vmem:[%s4 + $0x8] sm:$0xff]
  %v114 = vld [vmem:[%s4 + $0x10] sm:$0xff]
  %vm115 = vcmask 64512
  %v117 = vsel %vm115, %v112, 0
  %v120 = vsel %vm115, %v113, 0
  %v123 = vsel %vm115, %v114, 0
  %125 = vmatpush.msra.mxu0 0.0
  %126 = vmatpush.msra.mxu0 0.0
  %127 = vmatpush.msra.mxu0 0.0
  %128 = vmatpush.msra.mxu0 0.0
  %129 = vmatpush.msra.mxu0 0.0
  %130 = vmatpush.msra.mxu0 0.0
  %131 = vmatpush.msra.mxu0 0.0
  %132 = vmatpush.msra.mxu0 0.0
  %133 = vmatpush.msra.mxu0 0.0
  %134 = vmatpush.msra.mxu0 0.0
  %135 = vmatpush.msra.mxu0 0.0
  %136 = vmatpush.msra.mxu0 0.0
  %137 = vmatpush.msra.mxu0 0.0
  %138 = vmatpush.msra.mxu0 0.0
  %139 = vmatpush.msra.mxu0 0.0
  %140 = vmatpush.msra.mxu0 %v111
  %141 = vmatmul.f32.gmra.mxu0 %v117
  %v142 = vpop.f32.mrf.mxu0
  %v143 = vadd.f32 0.0, %v142
  %144 = vmatmul.f32.gmra.mxu0 %v120
  %v145 = vpop.f32.mrf.mxu0
  %v146 = vadd.f32 0.0, %v145
  %147 = vmatmul.f32.gmra.mxu0 %v123
  %v148 = vpop.f32.mrf.mxu0
  %v149 = vadd.f32 0.0, %v148
  %150 = vdwg.mxu0
  %151 = vrot.lane.b32.xlu0 %v143, 1
  %v152 = vpop.permute.xlu0 %151
  %v154 = vperm.slane %v46, 0
  %v156 = vmul.f32 %v154, %v152
  %v158 = vperm.slane %v48, 0
  %v160 = vmul.f32 %v158, %v146
  %v161 = vadd.f32 %v156, %v160
  %162 = vrot.lane.b32.xlu0 %v149, 127
  %v163 = vpop.permute.xlu0 %162
  %v165 = vperm.slane %v47, 0
  %v167 = vmul.f32 %v165, %v163
  %v168 = vadd.f32 %v161, %v167
  %v169 = vld [vmem:[%s5] sm:$0xff]
  %v170 = vld [vmem:[%s6] sm:$0xff]
  %171 = vadd.xlane.f32.xlu0 %v168
  %v172 = vpop.xlane.xlu0 %171
  %v173 = vmul.f32 %v168, %v168
  %174 = vadd.xlane.f32.xlu0 %v173
  %v175 = vpop.xlane.xlu0 %174
  %v176 = vmul.f32 %v172, 0.03125
  %v177 = vmul.f32 %v175, 0.03125
  %v178 = vmul.f32 %v176, %v176
  %v179 = vsub.f32 %v177, %v178
  %v180 = vadd.f32 %v179, 1e-05
  %v181 = vrsqrt.pop %v180
  %v182 = vmul.f32 %v181, %v180
  %v183 = vmul.f32 %v182, %v181
  %v184 = vmul.f32 0.5, %v183
  %v185 = vsub.f32 1.5, %v184
  %v186 = vmul.f32 %v181, %v185
  %vm187 = vweird.f32 %v180
  %vm188 = vweird.f32 %v181
  %vm189 = vmor %vm187, %vm188
  %v190 = vsel %vm189, %v181, %v186
  %v191 = vmul.f32 %v169, %v190
  %v192 = vmul.f32 %v176, %v191
  %v193 = vsub.f32 %v170, %v192
  %195 = vset.pattern.permute.xlu0 0
  %196 = vperm.xlu0 %195, %v191
  %v197 = vpop.permute.xlu0 %196
  %v199 = vmul.f32 %v168, %v197
  %201 = vset.pattern.permute.xlu0 0
  %202 = vperm.xlu0 %201, %v193
  %v203 = vpop.permute.xlu0 %202
  %v205 = vadd.f32 %v199, %v203
  %v206 = vmax.f32 %v205, 0.0
  %v207 = vmul.f32 %v206, %v158
  %v208 = vld [vmem:[%s7] sm:$0xff]
  %v209 = vld [vmem:[%s7 + $0x8] sm:$0xff]
  %v211 = vsel %vm115, %v208, 0
  %v214 = vsel %vm115, %v209, 0
  %216 = vmatpush.msra.mxu0 0.0
  %217 = vmatpush.msra.mxu0 0.0
  %218 = vmatpush.msra.mxu0 0.0
  %219 = vmatpush.msra.mxu0 0.0
  %220 = vmatpush.msra.mxu0 0.0
  %221 = vmatpush.msra.mxu0 0.0
  %222 = vmatpush.msra.mxu0 0.0
  %223 = vmatpush.msra.mxu0 0.0
  %224 = vmatpush.msra.mxu0 0.0
  %225 = vmatpush.msra.mxu0 0.0
  %226 = vmatpush.msra.mxu0 0.0
  %227 = vmatpush.msra.mxu0 0.0
  %228 = vmatpush.msra.mxu0 0.0
  %229 = vmatpush.msra.mxu0 0.0
  %230 = vmatpush.msra.mxu0 0.0
  %231 = vmatpush.msra.mxu0 %v207
  %232 = vmatmul.f32.gmra.mxu0 %v211
  %v233 = vpop.f32.mrf.mxu0
  %v234 = vadd.f32 0.0, %v233
  %235 = vmatmul.f32.gmra.mxu0 %v214
  %v236 = vpop.f32.mrf.mxu0
  %v237 = vadd.f32 0.0, %v236
  %238 = vdwg.mxu0
  %v239 = vld [vmem:[%s8] sm:$0xff]
  %v240 = vld [vmem:[%s8 + $0x8] sm:$0xff]
  %v241 = vld [vmem:[%s9] sm:$0xff]
  %v242 = vld [vmem:[%s9 + $0x8] sm:$0xff]
  %243 = vadd.xlane.f32.xlu0 %v234
  %v244 = vpop.xlane.xlu0 %243
  %245 = vadd.xlane.f32.xlu0 %v237
  %v246 = vpop.xlane.xlu0 %245
  %v247 = vmul.f32 %v234, %v234
  %v248 = vmul.f32 %v237, %v237
  %249 = vadd.xlane.f32.xlu0 %v247
  %v250 = vpop.xlane.xlu0 %249
  %251 = vadd.xlane.f32.xlu0 %v248
  %v252 = vpop.xlane.xlu0 %251
  %v253 = vmul.f32 %v244, 0.03125
  %v254 = vmul.f32 %v246, 0.03125
  %v255 = vmul.f32 %v250, 0.03125
  %v256 = vmul.f32 %v252, 0.03125
  %v257 = vmul.f32 %v253, %v253
  %v258 = vmul.f32 %v254, %v254
  %v259 = vsub.f32 %v255, %v257
  %v260 = vsub.f32 %v256, %v258
  %v261 = vadd.f32 %v259, 1e-05
  %v262 = vadd.f32 %v260, 1e-05
  %v263 = vrsqrt.pop %v261
  %v264 = vmul.f32 %v263, %v261
  %v265 = vmul.f32 %v264, %v263
  %v266 = vmul.f32 0.5, %v265
  %v267 = vsub.f32 1.5, %v266
  %v268 = vmul.f32 %v263, %v267
  %vm269 = vweird.f32 %v261
  %vm270 = vweird.f32 %v263
  %vm271 = vmor %vm269, %vm270
  %v272 = vsel %vm271, %v263, %v268
  %v273 = vrsqrt.pop %v262
  %v274 = vmul.f32 %v273, %v262
  %v275 = vmul.f32 %v274, %v273
  %v276 = vmul.f32 0.5, %v275
  %v277 = vsub.f32 1.5, %v276
  %v278 = vmul.f32 %v273, %v277
  %vm279 = vweird.f32 %v262
  %vm280 = vweird.f32 %v273
  %vm281 = vmor %vm279, %vm280
  %v282 = vsel %vm281, %v273, %v278
  %v283 = vmul.f32 %v239, %v272
  %v284 = vmul.f32 %v240, %v282
  %v285 = vmul.f32 %v253, %v283
  %v286 = vmul.f32 %v254, %v284
  %v287 = vsub.f32 %v241, %v285
  %v288 = vsub.f32 %v242, %v286
  %290 = vset.pattern.permute.xlu0 0
  %291 = vperm.xlu0 %290, %v283
  %v292 = vpop.permute.xlu0 %291
  %295 = vset.pattern.permute.xlu0 0
  %296 = vperm.xlu0 %295, %v284
  %v297 = vpop.permute.xlu0 %296
  %v299 = vmul.f32 %v234, %v292
  %v300 = vmul.f32 %v237, %v297
  %302 = vset.pattern.permute.xlu0 0
  %303 = vperm.xlu0 %302, %v287
  %v304 = vpop.permute.xlu0 %303
  %307 = vset.pattern.permute.xlu0 0
  %308 = vperm.xlu0 %307, %v288
  %v309 = vpop.permute.xlu0 %308
  %v311 = vadd.f32 %v299, %v304
  %v312 = vadd.f32 %v300, %v309
  %v313 = vadd.f32 %v311, %v44
  %v314 = vadd.f32 %v312, %v45
  %v315 = vmax.f32 %v313, 0.0
  %v316 = vmax.f32 %v314, 0.0
  %317 = vst [vmem:[%s13] sm:$0xff] %v315
  %318 = vst [vmem:[%s13 + $0x8] sm:$0xff] %v316
  // Predicated region
  $region54: #{bottleneck_forward.1} parent=0 // pred_check
    _
  $region55: #{bottleneck_forward.1} parent=0 // pred_check_branch
    %320 = sbr.rel (0) target = $region57
  $region56: #{bottleneck_forward.1} parent=0 // pred_region
    _
  $region57: #{bottleneck_forward.1} parent=0 // pred_fallthru
    _
  // Predicated region
  $region58: #{bottleneck_forward.1} parent=0 // pred_check
    _
  $region59: #{bottleneck_forward.1} parent=0 // pred_check_branch
    %322 = sbr.rel (0) target = $region61
  $region60: #{bottleneck_forward.1} parent=0 // pred_region
    _
  $region61: #{bottleneck_forward.1} parent=0 // pred_fallthru
    _

</llo_original>
